<compile_context>
chip_gen: v7x
topology: tpu7x:2x2x1
jax: 0.10.0
libtpu: 0.0.40
codegen_flags: <defaults>
</compile_context>

<pallas_src>
import math

import jax
import jax.numpy as jnp
from jax import lax
from jax.experimental import pallas as pl
from jax.experimental.pallas import tpu as pltpu


def _attn_kernel(x_ref, wq_ref, wk_ref, wv_ref, mask_ref, o_ref):
    """Fused qkv projection + causal attention for a group of G batch elems.

    x_ref   : (G, T, E) bf16  token+pos embeddings for this batch group
    w*_ref  : (E, E)    bf16  per-projection weights (stored as (in, out))
    mask_ref: (T, T)    f32   additive causal mask (0 / -1e30), resident
    o_ref   : (G, T, E) bf16  attention output
    """
    G, T, E = x_ref.shape

    x2 = x_ref[...].reshape(G * T, E)                           # bf16

    # qkv projections: bf16 MXU inputs, f32 accumulation.
    q = jnp.dot(x2, wq_ref[...], preferred_element_type=jnp.float32)
    k = jnp.dot(x2, wk_ref[...], preferred_element_type=jnp.float32)
    v = jnp.dot(x2, wv_ref[...], preferred_element_type=jnp.float32)

    # Scale q before the QK matmul: O(G*T*E) multiplies instead of O(G*T*T).
    q = (q * (1.0 / math.sqrt(E))).astype(jnp.bfloat16).reshape(G, T, E)
    k = k.astype(jnp.bfloat16).reshape(G, T, E)
    v = v.astype(jnp.bfloat16).reshape(G, T, E)

    # q @ k^T batched over the group: NT contraction, no k relayout.
    s = jnp.einsum('bqd,bkd->bqk', q, k,
                   preferred_element_type=jnp.float32)          # (G,T,T) f32

    # Precomputed additive causal mask (0 / -1e30).  Large finite negative
    # (not -inf) so a fully-masked row cannot produce NaN.
    s = s + mask_ref[...][None, :, :]

    # Softmax along keys.  Row max and denominator stay in f32; the exponent
    # goes through bf16 (faster EUP path on v6e/v7x, p is bf16 for P@V anyway).
    m = jnp.max(s, axis=-1, keepdims=True)
    p = jnp.exp((s - m).astype(jnp.bfloat16))                   # (G,T,T) bf16
    l = jnp.sum(p.astype(jnp.float32), axis=-1, keepdims=True)  # (G,T,1) f32
    inv = pl.reciprocal(l, approx=True)                         # EUP divide

    # Un-normalized P @ V; normalize afterwards (cheaper than scaling P).
    out = jnp.einsum('bqk,bkd->bqd', p, v,
                     preferred_element_type=jnp.float32)        # (G,T,E) f32

    # TODO(synk): training-mode dropout on the attention output omitted
    # (eval/inference semantics; nn.Dropout is identity in eval()).
    o_ref[...] = (out * inv).astype(o_ref.dtype)


def _proj_kernel(x_ref, w_ref, o_ref):
    """Logits tile: (TM, E) @ (E, TV) -> (TM, TV), bf16 in / f32 out."""
    o_ref[...] = jnp.dot(x_ref[...], w_ref[...],
                         preferred_element_type=jnp.float32)


def _round_up(x, m):
    return ((x + m - 1) // m) * m


def _pick_group(b, cap=8):
    """Batch group size for stage 1: largest divisor of b that is <= cap,
    keeping at least two grid steps when b > 1 (so both v7x TCs get work)."""
    if b <= 1:
        return 1
    target = min(cap, max(1, b // 2))
    for g in range(target, 0, -1):
        if b % g == 0:
            return g
    return 1


def llm_forward(idx, tok_table, pos_table, w_qkv, w_proj):
    """Pallas equivalent of LLM.forward(idx, targets=None) -> (logits, None).

    idx:       (B, T) int32 token ids
    tok_table: (vocab_size, n_embd) float32
    pos_table: (block_size, n_embd) float32
    w_qkv:     (n_embd, 3*n_embd)   float32  (pre-transposed Linear weight)
    w_proj:    (n_embd, vocab_size) float32  (pre-transposed Linear weight)
    """
    B, T = idx.shape
    E = tok_table.shape[1]
    V = w_proj.shape[1]
    assert T <= pos_table.shape[0], "sequence length exceeds block_size"

    # --- glue: embedding gathers + bf16 casts (halves DMA bytes, MXU fast path)
    tok_emb = jnp.take(tok_table, idx, axis=0)                 # (B, T, E)
    pos_emb = pos_table[:T]                                    # (T, E)
    emb = (tok_emb + pos_emb[None, :, :]).astype(jnp.bfloat16)

    wq = w_qkv[:, :E].astype(jnp.bfloat16)                     # (E, E) each,
    wk = w_qkv[:, E:2 * E].astype(jnp.bfloat16)                # sliced in the
    wv = w_qkv[:, 2 * E:].astype(jnp.bfloat16)                 # wrapper

    # Additive causal mask, built once in the wrapper.  Constant block index
    # -> DMA'd once and resident; no per-step iota/compare/select VALU work.
    row = lax.broadcasted_iota(jnp.int32, (T, T), 0)
    col = lax.broadcasted_iota(jnp.int32, (T, T), 1)
    mask = jnp.where(row >= col, 0.0, -1e30).astype(jnp.float32)

    # --- stage 1: fused qkv + causal attention, G batch elements per step ---
    G = _pick_group(B, cap=8)
    attn_out = pl.pallas_call(
        _attn_kernel,
        out_shape=jax.ShapeDtypeStruct((B, T, E), jnp.bfloat16),
        grid=(B // G,),
        in_specs=[
            pl.BlockSpec((G, T, E), lambda b: (b, 0, 0)),
            pl.BlockSpec((E, E), lambda b: (0, 0)),
            pl.BlockSpec((E, E), lambda b: (0, 0)),
            pl.BlockSpec((E, E), lambda b: (0, 0)),
            pl.BlockSpec((T, T), lambda b: (0, 0)),
        ],
        out_specs=pl.BlockSpec((G, T, E), lambda b: (b, 0, 0)),
        compiler_params=pltpu.CompilerParams(
            dimension_semantics=("parallel",),
            vmem_limit_bytes=48 * 1024 * 1024),
    )(emb, wq, wk, wv, mask)

    # --- stage 2: logits projection, batch folded into M, lane-dense vocab ---
    R = B * T
    tm = min(512, _round_up(R, 16))       # bf16 sublane packing -> 16-aligned
    R_pad = _round_up(R, tm)              # tm always divides R_pad
    tv = min(1024, _round_up(V, 128))     # lane-dense (multiple of 128)
    V_pad = _round_up(V, tv)              # tv always divides V_pad

    x2d = attn_out.reshape(R, E)
    if R_pad != R:
        x2d = jnp.pad(x2d, ((0, R_pad - R), (0, 0)))
    wp = w_proj.astype(jnp.bfloat16)
    if V_pad != V:
        wp = jnp.pad(wp, ((0, 0), (0, V_pad - V)))             # zero columns

    logits2d = pl.pallas_call(
        _proj_kernel,
        out_shape=jax.ShapeDtypeStruct((R_pad, V_pad), jnp.float32),
        grid=(R_pad // tm, V_pad // tv),
        in_specs=[
            pl.BlockSpec((tm, E), lambda i, j: (i, 0)),
            pl.BlockSpec((E, tv), lambda i, j: (0, j)),
        ],
        out_specs=pl.BlockSpec((tm, tv), lambda i, j: (i, j)),
        compiler_params=pltpu.CompilerParams(
            dimension_semantics=("parallel", "parallel"),
            vmem_limit_bytes=32 * 1024 * 1024),
    )(x2d, wp)

    logits = logits2d[:R, :V].reshape(B, T, V)
    loss = None  # targets=None path only
    return logits, loss


def _reference_forward(idx, tok_table, pos_table, w_qkv, w_proj):
    """Pure-JAX f32 reference of the PyTorch module (eval mode)."""
    B, T = idx.shape
    E = tok_table.shape[1]
    emb = jnp.take(tok_table, idx, axis=0) + pos_table[:T][None]
    qkv = emb @ w_qkv
    q, k, v = qkv[..., :E], qkv[..., E:2 * E], qkv[..., 2 * E:]
    wei = jnp.einsum("btd,bsd->bts", q, k) / jnp.sqrt(jnp.float32(E))
    mask = jnp.tril(jnp.ones((T, T), dtype=bool))
    wei = jnp.where(mask[None], wei, -jnp.inf)
    wei = jax.nn.softmax(wei, axis=-1)
    out = jnp.einsum("bts,bsd->btd", wei, v)
    return out @ w_proj


if __name__ == "__main__":
    # Small, forward-consistent shapes.
    batch = 2
    seq = 8          # T  (<= block_size)
    n_embd = 32      # E  (head_size == n_embd, as in the module)
    vocab_size = 64  # V
    block_size = 16

    key = jax.random.PRNGKey(0)
    k0, k1, k2, k3, k4 = jax.random.split(key, 5)

    tok_table = jax.random.normal(k0, (vocab_size, n_embd), jnp.float32) * 0.02
    pos_table = jax.random.normal(k1, (block_size, n_embd), jnp.float32) * 0.02
    w_qkv = jax.random.normal(k2, (n_embd, 3 * n_embd), jnp.float32) * 0.02
    w_proj = jax.random.normal(k3, (n_embd, vocab_size), jnp.float32) * 0.02
    idx = jax.random.randint(k4, (batch, seq), 0, vocab_size, jnp.int32)

    logits, loss = llm_forward(idx, tok_table, pos_table, w_qkv, w_proj)
    logits = jax.block_until_ready(logits)

    ref = _reference_forward(idx, tok_table, pos_table, w_qkv, w_proj)
    assert logits.shape == (batch, seq, vocab_size)
    assert loss is None
    max_err = float(jnp.max(jnp.abs(logits - ref)))
    assert max_err < 2e-3, f"mismatch vs reference (max abs err {max_err})"

    print("KERNEL_OK")
</pallas_src>

<mosaic_0001>
module attributes {stable_mosaic.version = 11 : i64} {
  func.func @_attn_kernel(%arg0: i32, %arg1: memref<1x8x32xbf16, #tpu.memory_space<vmem>>, %arg2: memref<32x32xbf16, #tpu.memory_space<vmem>>, %arg3: memref<32x32xbf16, #tpu.memory_space<vmem>>, %arg4: memref<32x32xbf16, #tpu.memory_space<vmem>>, %arg5: memref<8x8xf32, #tpu.memory_space<vmem>>, %arg6: memref<1x8x32xbf16, #tpu.memory_space<vmem>>) attributes {dimension_semantics = [#tpu.dimension_semantics<parallel>], iteration_bounds = array<i64: 2>, scalar_prefetch = 0 : i64, scratch_operands = 0 : i64, tpu.core_type = #tpu.core_type<tc>, window_params = [{transform_indices = @transform_0, window_bounds = array<i64: 1, 8, 32>}, {pipeline_mode = #tpu.pipeline_mode<synchronous>, transform_indices = @transform_1, window_bounds = array<i64: 32, 32>}, {pipeline_mode = #tpu.pipeline_mode<synchronous>, transform_indices = @transform_2, window_bounds = array<i64: 32, 32>}, {pipeline_mode = #tpu.pipeline_mode<synchronous>, transform_indices = @transform_3, window_bounds = array<i64: 32, 32>}, {pipeline_mode = #tpu.pipeline_mode<synchronous>, transform_indices = @transform_4, window_bounds = array<i64: 8, 8>}, {transform_indices = @transform_5, window_bounds = array<i64: 1, 8, 32>}]} {
    %c0 = arith.constant 0 : index
    %c0_0 = arith.constant 0 : index
    %c0_1 = arith.constant 0 : index
    %0 = vector.load %arg1[%c0, %c0_0, %c0_1] : memref<1x8x32xbf16, #tpu.memory_space<vmem>>, vector<1x8x32xbf16>
    %1 = vector.shape_cast %0 : vector<1x8x32xbf16> to vector<8x32xbf16>
    %c0_2 = arith.constant 0 : index
    %c0_3 = arith.constant 0 : index
    %2 = vector.load %arg2[%c0_2, %c0_3] : memref<32x32xbf16, #tpu.memory_space<vmem>>, vector<32x32xbf16>
    %cst = arith.constant dense<0.000000e+00> : vector<8x32xf32>
    %3 = tpu.matmul %1, %2, %cst {dimension_numbers = #tpu.dot_dimension_numbers<[1], [0], [0], [1], [0, 0, 1, 1], [], []>} : vector<8x32xbf16>, vector<32x32xbf16>, vector<8x32xf32> -> vector<8x32xf32>
    %c0_4 = arith.constant 0 : index
    %c0_5 = arith.constant 0 : index
    %4 = vector.load %arg3[%c0_4, %c0_5] : memref<32x32xbf16, #tpu.memory_space<vmem>>, vector<32x32xbf16>
    %cst_6 = arith.constant dense<0.000000e+00> : vector<8x32xf32>
    %5 = tpu.matmul %1, %4, %cst_6 {dimension_numbers = #tpu.dot_dimension_numbers<[1], [0], [0], [1], [0, 0, 1, 1], [], []>} : vector<8x32xbf16>, vector<32x32xbf16>, vector<8x32xf32> -> vector<8x32xf32>
    %c0_7 = arith.constant 0 : index
    %c0_8 = arith.constant 0 : index
    %6 = vector.load %arg4[%c0_7, %c0_8] : memref<32x32xbf16, #tpu.memory_space<vmem>>, vector<32x32xbf16>
    %cst_9 = arith.constant dense<0.000000e+00> : vector<8x32xf32>
    %7 = tpu.matmul %1, %6, %cst_9 {dimension_numbers = #tpu.dot_dimension_numbers<[1], [0], [0], [1], [0, 0, 1, 1], [], []>} : vector<8x32xbf16>, vector<32x32xbf16>, vector<8x32xf32> -> vector<8x32xf32>
    %cst_10 = arith.constant 0.176776692 : f32
    %8 = vector.broadcast %cst_10 : f32 to vector<8x32xf32>
    %9 = arith.mulf %3, %8 : vector<8x32xf32>
    %10 = arith.truncf %9 : vector<8x32xf32> to vector<8x32xbf16>
    %11 = vector.shape_cast %10 : vector<8x32xbf16> to vector<1x8x32xbf16>
    %12 = arith.truncf %5 : vector<8x32xf32> to vector<8x32xbf16>
    %13 = vector.shape_cast %12 : vector<8x32xbf16> to vector<1x8x32xbf16>
    %14 = arith.truncf %7 : vector<8x32xf32> to vector<8x32xbf16>
    %15 = vector.shape_cast %14 : vector<8x32xbf16> to vector<1x8x32xbf16>
    "tpu.trace_start"() <{level = 10 : i32, message = "bqd,bkd->bqk"}> : () -> ()
    %cst_11 = arith.constant dense<0.000000e+00> : vector<1x8x8xf32>
    %16 = tpu.matmul %11, %13, %cst_11 {dimension_numbers = #tpu.dot_dimension_numbers<[2], [2], [1], [1], [0, 0, 0, 1, 1, 1], [0], [0]>} : vector<1x8x32xbf16>, vector<1x8x32xbf16>, vector<1x8x8xf32> -> vector<1x8x8xf32>
    "tpu.trace_stop"() : () -> ()
    %c0_12 = arith.constant 0 : index
    %c0_13 = arith.constant 0 : index
    %17 = vector.load %arg5[%c0_12, %c0_13] : memref<8x8xf32, #tpu.memory_space<vmem>>, vector<8x8xf32>
    %18 = vector.shape_cast %17 : vector<8x8xf32> to vector<1x8x8xf32>
    %19 = arith.addf %16, %18 : vector<1x8x8xf32>
    %cst_14 = arith.constant dense<0xFF800000> : vector<1x8xf32>
    %20 = vector.multi_reduction <maximumf>, %19, %cst_14 [2] : vector<1x8x8xf32> to vector<1x8xf32>
    %21 = vector.shape_cast %20 : vector<1x8xf32> to vector<1x8x1xf32>
    %22 = vector.broadcast %21 : vector<1x8x1xf32> to vector<1x8x8xf32>
    %23 = arith.subf %19, %22 : vector<1x8x8xf32>
    %24 = arith.truncf %23 : vector<1x8x8xf32> to vector<1x8x8xbf16>
    %25 = math.exp %24 : vector<1x8x8xbf16>
    %26 = arith.extf %25 : vector<1x8x8xbf16> to vector<1x8x8xf32>
    %cst_15 = arith.constant dense<0.000000e+00> : vector<1x8xf32>
    %27 = vector.multi_reduction <add>, %26, %cst_15 [2] : vector<1x8x8xf32> to vector<1x8xf32>
    %28 = vector.shape_cast %27 : vector<1x8xf32> to vector<1x8x1xf32>
    %29 = tpu.reciprocal %28 {approx = true} : vector<1x8x1xf32> -> vector<1x8x1xf32>
    "tpu.trace_start"() <{level = 10 : i32, message = "bqk,bkd->bqd"}> : () -> ()
    %cst_16 = arith.constant dense<0.000000e+00> : vector<1x8x32xf32>
    %30 = tpu.matmul %25, %15, %cst_16 {dimension_numbers = #tpu.dot_dimension_numbers<[2], [1], [1], [2], [0, 0, 0, 1, 1, 2], [0], [0]>} : vector<1x8x8xbf16>, vector<1x8x32xbf16>, vector<1x8x32xf32> -> vector<1x8x32xf32>
    "tpu.trace_stop"() : () -> ()
    %31 = vector.broadcast %29 : vector<1x8x1xf32> to vector<1x8x32xf32>
    %32 = arith.mulf %30, %31 : vector<1x8x32xf32>
    %33 = arith.truncf %32 : vector<1x8x32xf32> to vector<1x8x32xbf16>
    %c0_17 = arith.constant 0 : index
    %c0_18 = arith.constant 0 : index
    %c0_19 = arith.constant 0 : index
    %34 = vector.load %arg6[%c0_17, %c0_18, %c0_19] : memref<1x8x32xbf16, #tpu.memory_space<vmem>>, vector<1x8x32xbf16>
    tpu.vector_store %arg6[%c0_17, %c0_18, %c0_19], %33 {strides = array<i32>} : memref<1x8x32xbf16, #tpu.memory_space<vmem>>, vector<1x8x32xbf16>,
    return
  }
  func.func @transform_0(%arg0: i32) -> (i32, i32, i32) {
    %c0_i32 = arith.constant 0 : i32
    %c0_i32_0 = arith.constant 0 : i32
    %c0_i32_1 = arith.constant 0 : i32
    return %arg0, %c0_i32, %c0_i32_0 : i32, i32, i32
  }
  func.func @transform_1(%arg0: i32) -> (i32, i32) {
    %c0_i32 = arith.constant 0 : i32
    %c0_i32_0 = arith.constant 0 : i32
    %c0_i32_1 = arith.constant 0 : i32
    return %c0_i32, %c0_i32_0 : i32, i32
  }
  func.func @transform_2(%arg0: i32) -> (i32, i32) {
    %c0_i32 = arith.constant 0 : i32
    %c0_i32_0 = arith.constant 0 : i32
    %c0_i32_1 = arith.constant 0 : i32
    return %c0_i32, %c0_i32_0 : i32, i32
  }
  func.func @transform_3(%arg0: i32) -> (i32, i32) {
    %c0_i32 = arith.constant 0 : i32
    %c0_i32_0 = arith.constant 0 : i32
    %c0_i32_1 = arith.constant 0 : i32
    return %c0_i32, %c0_i32_0 : i32, i32
  }
  func.func @transform_4(%arg0: i32) -> (i32, i32) {
    %c0_i32 = arith.constant 0 : i32
    %c0_i32_0 = arith.constant 0 : i32
    %c0_i32_1 = arith.constant 0 : i32
    return %c0_i32, %c0_i32_0 : i32, i32
  }
  func.func @transform_5(%arg0: i32) -> (i32, i32, i32) {
    %c0_i32 = arith.constant 0 : i32
    %c0_i32_0 = arith.constant 0 : i32
    %c0_i32_1 = arith.constant 0 : i32
    return %arg0, %c0_i32, %c0_i32_0 : i32, i32, i32
  }
}

</mosaic_0001>

<llo_original>
// kernel: tpu_custom_call.1
$region0: #{tpu_custom_call.1}
  #allocation0 [shape = 'u32[]', space=smem, size = 0x4, offset = 0x4, fixed_abs, tag = 'smem constant byte address 0x4 - core index']
  #allocation1 [shape = 'u32[144,128]{1,0:T(1,128)}', space=vmem, size = 0x12000, scoped, tag = 'internal scratch']
  %s0 = inlined_call_operand.hbm [shape: bf16[2,8,32], index: 0, kind: input, shape index: {}]
  %s1 = inlined_call_operand.hbm [shape: bf16[32,32], index: 1, kind: input, shape index: {}]
  %s2 = inlined_call_operand.hbm [shape: bf16[32,32], index: 2, kind: input, shape index: {}]
  %s3 = inlined_call_operand.hbm [shape: bf16[32,32], index: 3, kind: input, shape index: {}]
  %s4 = inlined_call_operand.vmem [shape: f32[8,8], index: 4, kind: input, shape index: {}]
  %s5 = inlined_call_operand.hbm [shape: bf16[2,8,32], index: 5, kind: output, shape index: {}]
  %s6 = sld [smem:[#allocation0]]
  $region69: #{tpu_custom_call.1} parent=0
    _
  %s8 = ssub.s32 1, %s6
  %s9 = scalar_select 0, %s8, %s6
  $region1: #{tpu_custom_call.1} parent=0
    #allocation2 [shape = 'u8[4096]{0}', space=vmem, size = 0x1000, scoped, tag = 'input window, operand 0']
    #allocation3 [shape = 's32[2]{0}', space=sflag, size = 0x8, scoped, tag = 'scoped memory for tpu_custom_call.1']
    #allocation4 [shape = 's32[2]{0}', space=sflag, size = 0x8, scoped, tag = 'scoped memory for tpu_custom_call.1']
    #allocation5 [shape = 'u8[8192]{0}', space=vmem, size = 0x2000, scoped, tag = 'input window, operand 1, single buffered']
    #allocation6 [shape = 's32[1]{0}', space=sflag, size = 0x4, scoped, tag = 'scoped memory for tpu_custom_call.1']
    #allocation7 [shape = 'u8[8192]{0}', space=vmem, size = 0x2000, scoped, tag = 'input window, operand 2, single buffered']
    #allocation8 [shape = 'u8[8192]{0}', space=vmem, size = 0x2000, scoped, tag = 'input window, operand 3, single buffered']
    #allocation9 [shape = 's32[1]{0}', space=sflag, size = 0x4, scoped, tag = 'scoped memory for tpu_custom_call.1']
    #allocation10 [shape = 'u8[4096]{0}', space=vmem, size = 0x1000, scoped, tag = 'output window, operand 0']
    %10 = vsyncpa [#allocation3], 0
    %s11 = scalar_lea.sflag [#allocation3], 1
    %12 = vsyncpa %s11, 0
    %13 = vsyncpa [#allocation6], 0
    %14 = vsyncpa [#allocation9], 0
    %15 = vsyncpa [#allocation4], 0
    %s16 = scalar_lea.sflag [#allocation4], 1
    %17 = vsyncpa %s16, 0
    loop: start=0, step=1, limit=4
    $region2: #{tpu_custom_call.1} parent=1 // loop_pre_header
      _
    $region3: #{tpu_custom_call.1} parent=1 // loop_header
      %s19 = sphi 0, %s23
      %p20 = scmp.ge.s32.totalorder %s19, 4
      %s29 = sphi 0, %s31
      %s32 = sphi 0, %s29
      %s33 = sphi 0, %s32
      %s49 = sphi 0, %s33
      %s53 = sphi 0, %s53
      %s55 = sphi 0, %s53
      %s56 = sphi 0, %s55
      %s70 = sphi 0, %s56
      %s74 = sphi 0, %s74
      %s76 = sphi 0, %s74
      %s77 = sphi 0, %s76
      %s91 = sphi 0, %s77
      %s95 = sphi 0, %s95
      %s97 = sphi 0, %s95
      %s98 = sphi 0, %s97
      %s112 = sphi 0, %s98
      %s116 = sphi 0, %s116
      %s118 = sphi 0, %s116
      %s119 = sphi 0, %s118
      %s133 = sphi 0, %s119
      %s139 = sphi 0, %s141
      %s142 = sphi 0, %s139
      %s143 = sphi 0, %s142
      %s159 = sphi 0, %s143
    $region4: #{tpu_custom_call.1} parent=1 // loop_header_branch
      %22 = sbr.rel (%p20) target = $region8
    $region5: #{tpu_custom_call.1} parent=1 // loop_body
      %s24 = ssub.s32 %s19, 1
      %s25 = ssub.s32 %s19, 2
      %s26 = sadd.s32 %s19, 1
      %s27 = ssub.s32 %s19, %s26
      %p28 = scmp.eq.s32.totalorder %s27, 0
      %s30 = sadd.s32 %s29, 1
      %s31 = scalar_select %p28, %s29, %s30
      %p34 = pneg %p28
      %p35 = scmp.eq.s32.totalorder %s19, 1
      %p36 = por %p34, %p35
      %p37 = scmp.ne.s32.totalorder %s29, %s32
      %p38 = scmp.eq.s32.totalorder %s19, 0
      %p39 = por %p37, %p38
      %p40 = scmp.ne.s32.totalorder %s29, %s32
      %p41 = scmp.eq.s32.totalorder %s24, 1
      %p42 = por %p40, %p41
      %p43 = scmp.ne.s32.totalorder %s32, %s33
      %p44 = scmp.eq.s32.totalorder %s24, 0
      %p45 = por %p43, %p44
      %p46 = scmp.ne.s32.totalorder %s32, %s33
      %p47 = scmp.eq.s32.totalorder %s25, 1
      %p48 = por %p46, %p47
      %p50 = scmp.ne.s32.totalorder %s33, %s49
      %p51 = scmp.eq.s32.totalorder %s25, 0
      %p52 = por %p50, %p51
      %s54 = sadd.s32 %s53, 1
      %p57 = scmp.eq.s32.totalorder %s19, 1
      %p58 = scmp.ne.s32.totalorder %s53, %s55
      %p59 = scmp.eq.s32.totalorder %s19, 0
      %p60 = por %p58, %p59
      %p61 = scmp.ne.s32.totalorder %s53, %s55
      %p62 = scmp.eq.s32.totalorder %s24, 1
      %p63 = por %p61, %p62
      %p64 = scmp.ne.s32.totalorder %s55, %s56
      %p65 = scmp.eq.s32.totalorder %s24, 0
      %p66 = por %p64, %p65
      %p67 = scmp.ne.s32.totalorder %s55, %s56
      %p68 = scmp.eq.s32.totalorder %s25, 1
      %p69 = por %p67, %p68
      %p71 = scmp.ne.s32.totalorder %s56, %s70
      %p72 = scmp.eq.s32.totalorder %s25, 0
      %p73 = por %p71, %p72
      %s75 = sadd.s32 %s74, 1
      %p78 = scmp.eq.s32.totalorder %s19, 1
      %p79 = scmp.ne.s32.totalorder %s74, %s76
      %p80 = scmp.eq.s32.totalorder %s19, 0
      %p81 = por %p79, %p80
      %p82 = scmp.ne.s32.totalorder %s74, %s76
      %p83 = scmp.eq.s32.totalorder %s24, 1
      %p84 = por %p82, %p83
      %p85 = scmp.ne.s32.totalorder %s76, %s77
      %p86 = scmp.eq.s32.totalorder %s24, 0
      %p87 = por %p85, %p86
      %p88 = scmp.ne.s32.totalorder %s76, %s77
      %p89 = scmp.eq.s32.totalorder %s25, 1
      %p90 = por %p88, %p89
      %p92 = scmp.ne.s32.totalorder %s77, %s91
      %p93 = scmp.eq.s32.totalorder %s25, 0
      %p94 = por %p92, %p93
      %s96 = sadd.s32 %s95, 1
      %p99 = scmp.eq.s32.totalorder %s19, 1
      %p100 = scmp.ne.s32.totalorder %s95, %s97
      %p101 = scmp.eq.s32.totalorder %s19, 0
      %p102 = por %p100, %p101
      %p103 = scmp.ne.s32.totalorder %s95, %s97
      %p104 = scmp.eq.s32.totalorder %s24, 1
      %p105 = por %p103, %p104
      %p106 = scmp.ne.s32.totalorder %s97, %s98
      %p107 = scmp.eq.s32.totalorder %s24, 0
      %p108 = por %p106, %p107
      %p109 = scmp.ne.s32.totalorder %s97, %s98
      %p110 = scmp.eq.s32.totalorder %s25, 1
      %p111 = por %p109, %p110
      %p113 = scmp.ne.s32.totalorder %s98, %s112
      %p114 = scmp.eq.s32.totalorder %s25, 0
      %p115 = por %p113, %p114
      %s117 = sadd.s32 %s116, 1
      %p120 = scmp.eq.s32.totalorder %s19, 1
      %p121 = scmp.ne.s32.totalorder %s116, %s118
      %p122 = scmp.eq.s32.totalorder %s19, 0
      %p123 = por %p121, %p122
      %p124 = scmp.ne.s32.totalorder %s116, %s118
      %p125 = scmp.eq.s32.totalorder %s24, 1
      %p126 = por %p124, %p125
      %p127 = scmp.ne.s32.totalorder %s118, %s119
      %p128 = scmp.eq.s32.totalorder %s24, 0
      %p129 = por %p127, %p128
      %p130 = scmp.ne.s32.totalorder %s118, %s119
      %p131 = scmp.eq.s32.totalorder %s25, 1
      %p132 = por %p130, %p131
      %p134 = scmp.ne.s32.totalorder %s119, %s133
      %p135 = scmp.eq.s32.totalorder %s25, 0
      %p136 = por %p134, %p135
      %s137 = ssub.s32 %s19, %s26
      %p138 = scmp.eq.s32.totalorder %s137, 0
      %s140 = sadd.s32 %s139, 1
      %s141 = scalar_select %p138, %s139, %s140
      %p144 = pneg %p138
      %p145 = scmp.eq.s32.totalorder %s19, 1
      %p146 = por %p144, %p145
      %p147 = scmp.ne.s32.totalorder %s139, %s142
      %p148 = scmp.eq.s32.totalorder %s19, 0
      %p149 = por %p147, %p148
      %p150 = scmp.ne.s32.totalorder %s139, %s142
      %p151 = scmp.eq.s32.totalorder %s24, 1
      %p152 = por %p150, %p151
      %p153 = scmp.ne.s32.totalorder %s142, %s143
      %p154 = scmp.eq.s32.totalorder %s24, 0
      %p155 = por %p153, %p154
      %p156 = scmp.ne.s32.totalorder %s142, %s143
      %p157 = scmp.eq.s32.totalorder %s25, 1
      %p158 = por %p156, %p157
      %p160 = scmp.ne.s32.totalorder %s143, %s159
      %p161 = scmp.eq.s32.totalorder %s25, 0
      %p162 = por %p160, %p161
      %p163 = scmp.le.s32.totalorder 1, %s19
      %p164 = scmp.lt.s32.totalorder %s19, 3
      %p165 = pnand %p163, %p164
      %p166 = pneg %p165
      // Predicated region
      $region9: #{tpu_custom_call.1} parent=5 // pred_check
        _
      $region10: #{tpu_custom_call.1} parent=5 // pred_check_branch
        %168 = sbr.rel (%p165) target = $region12
      $region11: #{tpu_custom_call.1} parent=5 // pred_region
        %s169 = ssub.s32 %s19, 1
        // Predicated region
        $region13: #{tpu_custom_call.1} parent=11 // pred_check
          %p170 = pneg %p66
        $region14: #{tpu_custom_call.1} parent=11 // pred_check_branch
          %172 = sbr.rel (%p170) target = $region16
        $region15: #{tpu_custom_call.1} parent=11 // pred_region
          %s174 = ssub.s32 256, 256
          %175 = vsyncadd [#allocation6], %s174
          %s176 = sshll.u32 [#allocation5], 4
          %s177 = int_to_ptr.vmem [resolvable:$true] %s176
          %182 = dma.hbm_to_vmem [thread:$0]  %s1, 256, %s177, [#allocation6], 64, 64, 4
        $region16: #{tpu_custom_call.1} parent=11 // pred_fallthru
          _
        // Predicated region
        $region17: #{tpu_custom_call.1} parent=11 // pred_check
          %p183 = pneg %p87
        $region18: #{tpu_custom_call.1} parent=11 // pred_check_branch
          %185 = sbr.rel (%p183) target = $region20
        $region19: #{tpu_custom_call.1} parent=11 // pred_region
          %s187 = ssub.s32 256, 256
          %188 = vsyncadd [#allocation6], %s187
          %s189 = sshll.u32 [#allocation7], 4
          %s190 = int_to_ptr.vmem [resolvable:$true] %s189
          %195 = dma.hbm_to_vmem [thread:$0]  %s2, 256, %s190, [#allocation6], 64, 64, 4
        $region20: #{tpu_custom_call.1} parent=11 // pred_fallthru
          _
        // Predicated region
        $region21: #{tpu_custom_call.1} parent=11 // pred_check
          %p196 = pneg %p108
        $region22: #{tpu_custom_call.1} parent=11 // pred_check_branch
          %198 = sbr.rel (%p196) target = $region24
        $region23: #{tpu_custom_call.1} parent=11 // pred_region
          %s200 = ssub.s32 256, 256
          %201 = vsyncadd [#allocation9], %s200
          %s202 = sshll.u32 [#allocation8], 4
          %s203 = int_to_ptr.vmem [resolvable:$true] %s202
          %208 = dma.hbm_to_vmem [thread:$0]  %s3, 256, %s203, [#allocation9], 64, 64, 4
        $region24: #{tpu_custom_call.1} parent=11 // pred_fallthru
          _
        // Predicated region
        $region25: #{tpu_custom_call.1} parent=11 // pred_check
          %p209 = pneg %p129
        $region26: #{tpu_custom_call.1} parent=11 // pred_check_branch
          %211 = sbr.rel (%p209) target = $region28
        $region27: #{tpu_custom_call.1} parent=11 // pred_region
          _
        $region28: #{tpu_custom_call.1} parent=11 // pred_fallthru
          _
      $region12: #{tpu_custom_call.1} parent=5 // pred_fallthru
        _
      %p212 = scmp.lt.s32.totalorder %s19, 2
      // Predicated region
      $region29: #{tpu_custom_call.1} parent=5 // pred_check
        %p213 = pneg %p212
      $region30: #{tpu_custom_call.1} parent=5 // pred_check_branch
        %215 = sbr.rel (%p213) target = $region32
      $region31: #{tpu_custom_call.1} parent=5 // pred_region
        // Predicated region
        $region33: #{tpu_custom_call.1} parent=31 // pred_check
          %p216 = pneg %p39
        $region34: #{tpu_custom_call.1} parent=31 // pred_check_branch
          %218 = sbr.rel (%p216) target = $region36
        $region35: #{tpu_custom_call.1} parent=31 // pred_region
          %s219 = sand.u32 %s29, 1
          %s220 = scalar_lea.sflag [#allocation3], %s219
          %s221 = sand.u32 %s29, 1
          %s222 = smul.addr %s221, 4
          %s223 = scalar_lea.vmem [#allocation2], %s222
          %s225 = ssub.s32 64, 64
          %226 = vsyncadd %s220, %s225
          %s227 = smul.addr %s19, 64
          %s228 = scalar_lea.hbm %s0, %s227
          %s230 = sshll.u32 %s223, 4
          %s231 = int_to_ptr.vmem [resolvable:$true] %s230
          %233 = dma.hbm_to_vmem [thread:$0]  %s228, 64, %s231, %s220
        $region36: #{tpu_custom_call.1} parent=31 // pred_fallthru
          _
      $region32: #{tpu_custom_call.1} parent=5 // pred_fallthru
        _
      %p234 = scmp.le.s32.totalorder 1, %s19
      %p235 = scmp.lt.s32.totalorder %s19, 3
      %p236 = pnand %p234, %p235
      %p237 = pneg %p236
      // Predicated region
      $region37: #{tpu_custom_call.1} parent=5 // pred_check
        _
      $region38: #{tpu_custom_call.1} parent=5 // pred_check_branch
        %239 = sbr.rel (%p236) target = $region40
      $region39: #{tpu_custom_call.1} parent=5 // pred_region
        %s240 = ssub.s32 %s19, 1
        %s241 = sand.u32 %s32, 1
        %s242 = scalar_lea.sflag [#allocation3], %s241
        %s243 = sand.u32 %s32, 1
        %s244 = smul.addr %s243, 4
        %s245 = scalar_lea.vmem [#allocation2], %s244
        // Predicated region
        $region41: #{tpu_custom_call.1} parent=39 // pred_check
          %p246 = pneg %p45
        $region42: #{tpu_custom_call.1} parent=39 // pred_check_branch
          %248 = sbr.rel (%p246) target = $region44
        $region43: #{tpu_custom_call.1} parent=39 // pred_region
          %249 = dma.done %s242, 64
        $region44: #{tpu_custom_call.1} parent=39 // pred_fallthru
          _
        // Predicated region
        $region45: #{tpu_custom_call.1} parent=39 // pred_check
          %p250 = pneg %p66
        $region46: #{tpu_custom_call.1} parent=39 // pred_check_branch
          %252 = sbr.rel (%p250) target = $region48
        $region47: #{tpu_custom_call.1} parent=39 // pred_region
          %253 = dma.done [#allocation6], 256
        $region48: #{tpu_custom_call.1} parent=39 // pred_fallthru
          _
        // Predicated region
        $region49: #{tpu_custom_call.1} parent=39 // pred_check
          %p254 = pneg %p87
        $region50: #{tpu_custom_call.1} parent=39 // pred_check_branch
          %256 = sbr.rel (%p254) target = $region52
        $region51: #{tpu_custom_call.1} parent=39 // pred_region
          %257 = dma.done [#allocation6], 256
        $region52: #{tpu_custom_call.1} parent=39 // pred_fallthru
          _
        // Predicated region
        $region53: #{tpu_custom_call.1} parent=39 // pred_check
          %p258 = pneg %p108
        $region54: #{tpu_custom_call.1} parent=39 // pred_check_branch
          %260 = sbr.rel (%p258) target = $region56
        $region55: #{tpu_custom_call.1} parent=39 // pred_region
          %261 = dma.done [#allocation9], 256
        $region56: #{tpu_custom_call.1} parent=39 // pred_fallthru
          _
        %s262 = sand.u32 %s32, 1
        %s263 = scalar_lea.sflag [#allocation3], %s262
        %s264 = sand.u32 %s32, 1
        %s265 = smul.addr %s264, 4
        %s266 = scalar_lea.vmem [#allocation2], %s265
        %p267 = pneg %p45
        %p268 = pneg %p42
        %p269 = pneg %p66
        %p270 = pneg %p63
        %p271 = pneg %p87
        %p272 = pneg %p84
        %p273 = pneg %p108
        %p274 = pneg %p105
        %p275 = pneg %p129
        %p276 = pneg %p126
        %p277 = pneg %p155
        %p278 = pneg %p152
        %s279 = sand.u32 %s142, 1
        %s280 = scalar_lea.sflag [#allocation4], %s279
        %s281 = sand.u32 %s142, 1
        %s282 = smul.addr %s281, 4
        %s283 = scalar_lea.vmem [#allocation10], %s282
        %v285 = vld [vmem:[%s245] sm:$0xf]
        %v286 = vld [vmem:[#allocation5] sm:$0xf]
        %v287 = vld [vmem:[#allocation5 + $0x4] sm:$0xf]
        %v288 = vld [vmem:[#allocation5 + $0x8] sm:$0xf]
        %v289 = vld [vmem:[#allocation5 + $0xc] sm:$0xf]
        %v294 = vunpack.c.l.b16 %v286
        %v295 = vunpack.c.l.b16 %v287
        %v296 = vunpack.c.l.b16 %v288
        %v297 = vunpack.c.l.b16 %v289
        %v298 = vpack.c.b16 %v295, %v294
        %v299 = vpack.c.b16 %v297, %v296
        %vm302 = vcmask 261120
        %v304 = vsel %vm302, %v285, 0
        %306 = vmatprep.subr.bf16.mxu0 0
        %307 = vmatpush1.bf16.msra.mxu0 %v298
        %308 = vmatprep.subr.bf16.mxu0 0
        %309 = vmatpush1.bf16.msra.mxu0 %v299
        %310 = vmatprep.subr.bf16.mxu0 0
        %311 = vmatpush1.bf16.msra.mxu0 0
        %312 = vmatprep.subr.bf16.mxu0 0
        %313 = vmatpush1.bf16.msra.mxu0 0
        %314 = vmatprep.subr.bf16.mxu0 0
        %315 = vmatpush1.bf16.msra.mxu0 0
        %316 = vmatprep.subr.bf16.mxu0 0
        %317 = vmatpush1.bf16.msra.mxu0 0
        %318 = vmatprep.subr.bf16.mxu0 0
        %319 = vmatpush1.bf16.msra.mxu0 0
        %320 = vmatprep.subr.bf16.mxu0 0
        %321 = vmatpush1.bf16.msra.mxu0 0
        %322 = vmatprep.subr.bf16.mxu0 0
        %323 = vmatpush1.bf16.msra.mxu0 0
        %324 = vmatprep.subr.bf16.mxu0 0
        %325 = vmatpush1.bf16.msra.mxu0 0
        %326 = vmatprep.subr.bf16.mxu0 0
        %327 = vmatpush1.bf16.msra.mxu0 0
        %328 = vmatprep.subr.bf16.mxu0 0
        %329 = vmatpush1.bf16.msra.mxu0 0
        %330 = vmatprep.subr.bf16.mxu0 0
        %331 = vmatpush1.bf16.msra.mxu0 0
        %332 = vmatprep.subr.bf16.mxu0 0
        %333 = vmatpush1.bf16.msra.mxu0 0
        %334 = vmatprep.subr.bf16.mxu0 0
        %335 = vmatpush1.bf16.msra.mxu0 0
        %336 = vmatprep.subr.bf16.mxu0 0
        %337 = vmatpush1.bf16.msra.mxu0 0
        %338 = vmatprep.mubr.bf16.mxu0 0
        %339 = vmatmul.mubr.bf16.gmra.mrb[0].mxu0 %v304
        %v340 = vpop.f32.mrb[0].mxu0
        %v341 = vadd.f32 0.0, %v340
        %v342 = vpop.f32.mrb[0].mxu0
        %v343 = vpop.f32.mrb[0].mxu0
        %v344 = vpop.f32.mrb[0].mxu0
        %345 = vdwg.mxu0
        %v346 = vld [vmem:[#allocation7] sm:$0xf]
        %v347 = vld [vmem:[#allocation7 + $0x4] sm:$0xf]
        %v348 = vld [vmem:[#allocation7 + $0x8] sm:$0xf]
        %v349 = vld [vmem:[#allocation7 + $0xc] sm:$0xf]
        %v354 = vunpack.c.l.b16 %v346
        %v355 = vunpack.c.l.b16 %v347
        %v356 = vunpack.c.l.b16 %v348
        %v357 = vunpack.c.l.b16 %v349
        %v358 = vpack.c.b16 %v355, %v354
        %v359 = vpack.c.b16 %v357, %v356
        %362 = vmatprep.subr.bf16.mxu0 0
        %363 = vmatpush1.bf16.msra.mxu0 %v358
        %364 = vmatprep.subr.bf16.mxu0 0
        %365 = vmatpush1.bf16.msra.mxu0 %v359
        %366 = vmatprep.subr.bf16.mxu0 0
        %367 = vmatpush1.bf16.msra.mxu0 0
        %368 = vmatprep.subr.bf16.mxu0 0
        %369 = vmatpush1.bf16.msra.mxu0 0
        %370 = vmatprep.subr.bf16.mxu0 0
        %371 = vmatpush1.bf16.msra.mxu0 0
        %372 = vmatprep.subr.bf16.mxu0 0
        %373 = vmatpush1.bf16.msra.mxu0 0
        %374 = vmatprep.subr.bf16.mxu0 0
        %375 = vmatpush1.bf16.msra.mxu0 0
        %376 = vmatprep.subr.bf16.mxu0 0
        %377 = vmatpush1.bf16.msra.mxu0 0
        %378 = vmatprep.subr.bf16.mxu0 0
        %379 = vmatpush1.bf16.msra.mxu0 0
        %380 = vmatprep.subr.bf16.mxu0 0
        %381 = vmatpush1.bf16.msra.mxu0 0
        %382 = vmatprep.subr.bf16.mxu0 0
        %383 = vmatpush1.bf16.msra.mxu0 0
        %384 = vmatprep.subr.bf16.mxu0 0
        %385 = vmatpush1.bf16.msra.mxu0 0
        %386 = vmatprep.subr.bf16.mxu0 0
        %387 = vmatpush1.bf16.msra.mxu0 0
        %388 = vmatprep.subr.bf16.mxu0 0
        %389 = vmatpush1.bf16.msra.mxu0 0
        %390 = vmatprep.subr.bf16.mxu0 0
        %391 = vmatpush1.bf16.msra.mxu0 0
        %392 = vmatprep.subr.bf16.mxu0 0
        %393 = vmatpush1.bf16.msra.mxu0 0
        %394 = vmatprep.mubr.bf16.mxu0 0
        %395 = vmatmul.mubr.bf16.gmra.mrb[0].mxu0 %v304
        %v396 = vpop.f32.mrb[0].mxu0
        %v397 = vadd.f32 0.0, %v396
        %v398 = vpop.f32.mrb[0].mxu0
        %v399 = vpop.f32.mrb[0].mxu0
        %v400 = vpop.f32.mrb[0].mxu0
        %401 = vdwg.mxu0
        %v402 = vld [vmem:[#allocation8] sm:$0xf]
        %v403 = vld [vmem:[#allocation8 + $0x4] sm:$0xf]
        %v404 = vld [vmem:[#allocation8 + $0x8] sm:$0xf]
        %v405 = vld [vmem:[#allocation8 + $0xc] sm:$0xf]
        %v410 = vunpack.c.l.b16 %v402
        %v411 = vunpack.c.l.b16 %v403
        %v412 = vunpack.c.l.b16 %v404
        %v413 = vunpack.c.l.b16 %v405
        %v414 = vpack.c.b16 %v411, %v410
        %v415 = vpack.c.b16 %v413, %v412
        %418 = vmatprep.subr.bf16.mxu0 0
        %419 = vmatpush1.bf16.msra.mxu0 %v414
        %420 = vmatprep.subr.bf16.mxu0 0
        %421 = vmatpush1.bf16.msra.mxu0 %v415
        %422 = vmatprep.subr.bf16.mxu0 0
        %423 = vmatpush1.bf16.msra.mxu0 0
        %424 = vmatprep.subr.bf16.mxu0 0
        %425 = vmatpush1.bf16.msra.mxu0 0
        %426 = vmatprep.subr.bf16.mxu0 0
        %427 = vmatpush1.bf16.msra.mxu0 0
        %428 = vmatprep.subr.bf16.mxu0 0
        %429 = vmatpush1.bf16.msra.mxu0 0
        %430 = vmatprep.subr.bf16.mxu0 0
        %431 = vmatpush1.bf16.msra.mxu0 0
        %432 = vmatprep.subr.bf16.mxu0 0
        %433 = vmatpush1.bf16.msra.mxu0 0
        %434 = vmatprep.subr.bf16.mxu0 0
        %435 = vmatpush1.bf16.msra.mxu0 0
        %436 = vmatprep.subr.bf16.mxu0 0
        %437 = vmatpush1.bf16.msra.mxu0 0
        %438 = vmatprep.subr.bf16.mxu0 0
        %439 = vmatpush1.bf16.msra.mxu0 0
        %440 = vmatprep.subr.bf16.mxu0 0
        %441 = vmatpush1.bf16.msra.mxu0 0
        %442 = vmatprep.subr.bf16.mxu0 0
        %443 = vmatpush1.bf16.msra.mxu0 0
        %444 = vmatprep.subr.bf16.mxu0 0
        %445 = vmatpush1.bf16.msra.mxu0 0
        %446 = vmatprep.subr.bf16.mxu0 0
        %447 = vmatpush1.bf16.msra.mxu0 0
        %448 = vmatprep.subr.bf16.mxu0 0
        %449 = vmatpush1.bf16.msra.mxu0 0
        %450 = vmatprep.mubr.bf16.mxu0 0
        %451 = vmatmul.mubr.bf16.gmra.mrb[0].mxu0 %v304
        %v452 = vpop.f32.mrb[0].mxu0
        %v453 = vadd.f32 0.0, %v452
        %v454 = vpop.f32.mrb[0].mxu0
        %v455 = vpop.f32.mrb[0].mxu0
        %v456 = vpop.f32.mrb[0].mxu0
        %457 = vdwg.mxu0
        %v458 = vmul.f32 %v341, 0.17677669
        %v459 = vpack.c.bf16 %v458, %v458
        %v460 = vpack.c.bf16 %v397, %v397
        %v461 = vpack.c.bf16 %v453, %v453
        %v462 = vld [vmem:[%s4] sm:$0xff]
        %v464 = vsel %vm302, %v459, 0
        %v467 = vsel %vm302, %v460, 0
        %469 = vmatprep.subr.bf16.mxu0 0
        %470 = vmatpush1.bf16.xpose.msra.mxu0 %v467
        %471 = vmatprep.subr.bf16.mxu0 0
        %472 = vmatpush1.bf16.xpose.msra.mxu0 0
        %473 = vmatprep.subr.bf16.mxu0 0
        %474 = vmatpush1.bf16.xpose.msra.mxu0 0
        %475 = vmatprep.subr.bf16.mxu0 0
        %476 = vmatpush1.bf16.xpose.msra.mxu0 0
        %477 = vmatprep.subr.bf16.mxu0 0
        %478 = vmatpush1.bf16.xpose.msra.mxu0 0
        %479 = vmatprep.subr.bf16.mxu0 0
        %480 = vmatpush1.bf16.xpose.msra.mxu0 0
        %481 = vmatprep.subr.bf16.mxu0 0
        %482 = vmatpush1.bf16.xpose.msra.mxu0 0
        %483 = vmatprep.subr.bf16.mxu0 0
        %484 = vmatpush1.bf16.xpose.msra.mxu0 0
        %485 = vmatprep.subr.bf16.mxu0 0
        %486 = vmatpush1.bf16.xpose.msra.mxu0 0
        %487 = vmatprep.subr.bf16.mxu0 0
        %488 = vmatpush1.bf16.xpose.msra.mxu0 0
        %489 = vmatprep.subr.bf16.mxu0 0
        %490 = vmatpush1.bf16.xpose.msra.mxu0 0
        %491 = vmatprep.subr.bf16.mxu0 0
        %492 = vmatpush1.bf16.xpose.msra.mxu0 0
        %493 = vmatprep.subr.bf16.mxu0 0
        %494 = vmatpush1.bf16.xpose.msra.mxu0 0
        %495 = vmatprep.subr.bf16.mxu0 0
        %496 = vmatpush1.bf16.xpose.msra.mxu0 0
        %497 = vmatprep.subr.bf16.mxu0 0
        %498 = vmatpush1.bf16.xpose.msra.mxu0 0
        %499 = vmatprep.subr.bf16.mxu0 0
        %500 = vmatpush1.bf16.xpose.msra.mxu0 0
        %501 = vmatprep.mubr.bf16.mxu0 0
        %502 = vmatmul.mubr.bf16.gmra.mrb[0].mxu0 %v464
        %v503 = vpop.f32.mrb[0].mxu0
        %v504 = vadd.f32 %v462, %v503
        %v505 = vpop.f32.mrb[0].mxu0
        %v506 = vpop.f32.mrb[0].mxu0
        %v507 = vpop.f32.mrb[0].mxu0
        %508 = vdwg.mxu0
        %vm509 = vcmask 64512
        %v510 = vsel %vm509, %v504, -inf
        %511 = vmax.xlane.f32.xlu0 %v510
        %v512 = vpop.xlane.xlu0 %511
        %v513 = vsub.f32 %v504, %v512
        %v514 = vpack.c.bf16 %v513, %v513
        %v516 = vmul.bf16 %v514, 1069105081
        %v517 = vpow.bf16.pop %v516
        %v518 = vunpack.c.l.bf16 %v517
        %v519 = vsel %vm509, %v518, 0.0
        %520 = vadd.xlane.f32.xlu0 %v519
        %v521 = vpop.xlane.xlu0 %520
        %v522 = vrcp.pop %v521
        %v524 = vsel %vm509, %v517, 0
        %vm526 = vcmask 1043456
        %v528 = vsel %vm526, %v461, 0
        %530 = vmatprep.subr.bf16.mxu0 0
        %531 = vmatpush1.bf16.msra.mxu0 %v528
        %532 = vmatprep.subr.bf16.mxu0 0
        %533 = vmatpush1.bf16.msra.mxu0 0
        %534 = vmatprep.subr.bf16.mxu0 0
        %535 = vmatpush1.bf16.msra.mxu0 0
        %536 = vmatprep.subr.bf16.mxu0 0
        %537 = vmatpush1.bf16.msra.mxu0 0
        %538 = vmatprep.subr.bf16.mxu0 0
        %539 = vmatpush1.bf16.msra.mxu0 0
        %540 = vmatprep.subr.bf16.mxu0 0
        %541 = vmatpush1.bf16.msra.mxu0 0
        %542 = vmatprep.subr.bf16.mxu0 0
        %543 = vmatpush1.bf16.msra.mxu0 0
        %544 = vmatprep.subr.bf16.mxu0 0
        %545 = vmatpush1.bf16.msra.mxu0 0
        %546 = vmatprep.subr.bf16.mxu0 0
        %547 = vmatpush1.bf16.msra.mxu0 0
        %548 = vmatprep.subr.bf16.mxu0 0
        %549 = vmatpush1.bf16.msra.mxu0 0
        %550 = vmatprep.subr.bf16.mxu0 0
        %551 = vmatpush1.bf16.msra.mxu0 0
        %552 = vmatprep.subr.bf16.mxu0 0
        %553 = vmatpush1.bf16.msra.mxu0 0
        %554 = vmatprep.subr.bf16.mxu0 0
        %555 = vmatpush1.bf16.msra.mxu0 0
        %556 = vmatprep.subr.bf16.mxu0 0
        %557 = vmatpush1.bf16.msra.mxu0 0
        %558 = vmatprep.subr.bf16.mxu0 0
        %559 = vmatpush1.bf16.msra.mxu0 0
        %560 = vmatprep.subr.bf16.mxu0 0
        %561 = vmatpush1.bf16.msra.mxu0 0
        %562 = vmatprep.mubr.bf16.mxu0 0
        %563 = vmatmul.mubr.bf16.gmra.mrb[0].mxu0 %v524
        %v564 = vpop.f32.mrb[0].mxu0
        %v565 = vadd.f32 0.0, %v564
        %v566 = vpop.f32.mrb[0].mxu0
        %v567 = vpop.f32.mrb[0].mxu0
        %v568 = vpop.f32.mrb[0].mxu0
        %569 = vdwg.mxu0
        %v570 = vmul.f32 %v565, %v522
        %v571 = vpack.c.bf16 %v570, %v570
        %vm572 = vcmask 257024
        %573 = vst.msk [vmem:[%s283] sm:$0xf] %vm572, %v571
        %s574 = sand.u32 %s142, 1
        %s575 = scalar_lea.sflag [#allocation4], %s574
        %s576 = sand.u32 %s142, 1
        %s577 = smul.addr %s576, 4
        %s578 = scalar_lea.vmem [#allocation10], %s577
        // Predicated region
        $region57: #{tpu_custom_call.1} parent=39 // pred_check
          %p579 = pneg %p152
        $region58: #{tpu_custom_call.1} parent=39 // pred_check_branch
          %581 = sbr.rel (%p579) target = $region60
        $region59: #{tpu_custom_call.1} parent=39 // pred_region
          %s583 = ssub.s32 64, 64
          %584 = vsyncadd %s575, %s583
          %s585 = smul.addr %s24, 64
          %s586 = scalar_lea.hbm %s5, %s585
          %s588 = sshll.u32 %s578, 4
          %s589 = int_to_ptr.vmem [resolvable:$true] %s588
          %591 = dma.vmem_to_hbm [thread:$0]  %s589, 64, %s586, %s575
        $region60: #{tpu_custom_call.1} parent=39 // pred_fallthru
          _
      $region40: #{tpu_custom_call.1} parent=5 // pred_fallthru
        _
      %p592 = scmp.le.s32.totalorder 2, %s19
      // Predicated region
      $region61: #{tpu_custom_call.1} parent=5 // pred_check
        %p593 = pneg %p592
      $region62: #{tpu_custom_call.1} parent=5 // pred_check_branch
        %595 = sbr.rel (%p593) target = $region64
      $region63: #{tpu_custom_call.1} parent=5 // pred_region
        %s596 = ssub.s32 %s19, 2
        // Predicated region
        $region65: #{tpu_custom_call.1} parent=63 // pred_check
          %p597 = pneg %p158
        $region66: #{tpu_custom_call.1} parent=63 // pred_check_branch
          %599 = sbr.rel (%p597) target = $region68
        $region67: #{tpu_custom_call.1} parent=63 // pred_region
          %s600 = sand.u32 %s143, 1
          %s601 = scalar_lea.sflag [#allocation4], %s600
          %s602 = sand.u32 %s143, 1
          %s603 = smul.addr %s602, 4
          %s604 = scalar_lea.vmem [#allocation10], %s603
          %605 = dma.done %s601, 64
        $region68: #{tpu_custom_call.1} parent=63 // pred_fallthru
          _
      $region64: #{tpu_custom_call.1} parent=5 // pred_fallthru
        _
    $region6: #{tpu_custom_call.1} parent=1 // loop_footer
      %s23 = sadd.s32 1, %s19
    $region7: #{tpu_custom_call.1} parent=1 // loop_footer_branch
      %18 = sbr.rel target = $region3
    $region8: #{tpu_custom_call.1} parent=1 // loop_exit
      _
    %606 = vsyncpa [#allocation3], 1
    %s607 = scalar_lea.sflag [#allocation3], 1
    %608 = vsyncpa %s607, 1
    %609 = vsyncpa [#allocation6], 1
    %610 = vsyncpa [#allocation9], 1
    %611 = vsyncpa [#allocation4], 1
    %s612 = scalar_lea.sflag [#allocation4], 1
    %613 = vsyncpa %s612, 1

</llo_original>
